<compile_context>
chip_gen: v7x
topology: tpu7x:2x2x1
jax: 0.10.0
libtpu: 0.0.40
codegen_flags: <defaults>
</compile_context>

<pallas_src>
import jax
import jax.numpy as jnp
from jax.experimental import pallas as pl
from jax.experimental.pallas import tpu as pltpu


def _drop_path_kernel(mask_ref, x_ref, o_ref):
    # mask_ref: (1, tc) per-N mask expanded over channels; x_ref/o_ref: (bb, tc).
    o_ref[...] = x_ref[...] * mask_ref[...]


def _make_mask(key, n, keep_prob, scale_by_keep, dtype):
    """Per-index-along-dim-1 keep mask, values in {0, 1/keep_prob (or 1)}."""
    keep = jax.random.bernoulli(key, p=keep_prob, shape=(n,))
    scale = (1.0 / keep_prob) if (scale_by_keep and keep_prob > 0.0) else 1.0
    return jnp.where(keep, jnp.float32(scale), jnp.float32(0.0)).astype(dtype)


def _choose_blocks(B, NC, itemsize, target_bytes=2 * 1024 * 1024):
    """Pick (bb, tc) block dims: ~2 MiB, lane-dense, legal on all TPU gens."""
    # Sublane multiple for the second-to-last block dim (8 for f32, 16 bf16, 32 i8).
    sub = max(8, 32 // itemsize)
    # Lane (last) dim: keep full extent when it fits the budget with `sub` rows,
    # or when it is not 128-aligned (full extent is always a legal block dim).
    if NC % 128 != 0 or NC * itemsize * sub <= target_bytes:
        tc = NC
    else:
        tc = max(128, min(NC, (target_bytes // (sub * itemsize)) // 128 * 128))
    # Rows per block.
    bb = target_bytes // max(1, tc * itemsize)
    if bb >= B:
        bb = B                       # full extent along batch -> always legal
    else:
        bb = max(sub, (bb // sub) * sub)
    return bb, tc


def drop_path(x, *, seed=0, drop_prob=0.0, training=False, scale_by_keep=True):
    """JAX/Pallas equivalent of the PyTorch drop_path function."""
    if drop_prob == 0.0 or not training:
        return x
    assert x.ndim >= 2, "drop_path expects x with at least 2 dims (uses x.shape[1])"
    keep_prob = 1.0 - drop_prob

    orig_shape = x.shape
    B, N = orig_shape[0], orig_shape[1]
    C = 1
    for d in orig_shape[2:]:
        C *= d
    NC = N * C

    # Per-N mask, expanded across the collapsed trailing dims so the kernel's
    # broadcast is along a lane-dense last dimension.
    key = jax.random.PRNGKey(seed)
    mask_n = _make_mask(key, N, keep_prob, scale_by_keep, x.dtype)      # (N,)
    mask_flat = jnp.repeat(mask_n, C).reshape(1, NC)                     # (1, N*C)

    x2 = x.reshape(B, NC)  # free reshape (row-major contiguous)

    itemsize = jnp.dtype(x.dtype).itemsize
    bb, tc = _choose_blocks(B, NC, itemsize)
    grid = (pl.cdiv(B, bb), pl.cdiv(NC, tc))

    out2 = pl.pallas_call(
        _drop_path_kernel,
        out_shape=jax.ShapeDtypeStruct((B, NC), x.dtype),
        grid_spec=pltpu.PrefetchScalarGridSpec(
            num_scalar_prefetch=0,
            grid=grid,
            in_specs=[
                pl.BlockSpec((1, tc), lambda i, j: (0, j)),    # tiny per-N mask slab
                pl.BlockSpec((bb, tc), lambda i, j: (i, j)),   # x tile
            ],
            out_specs=pl.BlockSpec((bb, tc), lambda i, j: (i, j)),
        ),
        compiler_params=pltpu.CompilerParams(
            dimension_semantics=("parallel", "parallel"),
            vmem_limit_bytes=32 * 1024 * 1024,
        ),
    )(mask_flat, x2)

    return out2.reshape(orig_shape)


class DropPath:
    """Stateless JAX counterpart of the PyTorch DropPath module."""

    def __init__(self, drop_prob: float = 0.0, scale_by_keep: bool = True):
        self.drop_prob = drop_prob
        self.scale_by_keep = scale_by_keep
        self.training = True

    def __call__(self, x, seed=0):
        return drop_path(
            x,
            seed=seed,
            drop_prob=self.drop_prob,
            training=self.training,
            scale_by_keep=self.scale_by_keep,
        )


if __name__ == "__main__":
    key = jax.random.PRNGKey(0)

    # --- f32 case ---------------------------------------------------------
    B, N, C = 2, 8, 32
    x = jax.random.normal(key, (B, N, C), dtype=jnp.float32)

    module = DropPath(drop_prob=0.25, scale_by_keep=True)
    module.training = True
    seed = 0
    y = jax.block_until_ready(module(x, seed=seed))

    # Reference: same deterministic mask applied with (1, N, 1) broadcast.
    keep_prob = 1.0 - module.drop_prob
    mask_ref = _make_mask(jax.random.PRNGKey(seed), N, keep_prob, True, x.dtype)
    ref = x * mask_ref.reshape(1, N, 1)
    assert jnp.allclose(y, ref, atol=1e-6), "f32 output mismatch vs reference"
    ok_vals = jnp.logical_or(
        jnp.isclose(mask_ref, 0.0, atol=1e-6),
        jnp.isclose(mask_ref, 1.0 / keep_prob, atol=1e-6),
    )
    assert bool(jnp.all(ok_vals)), "mask values not in {0, 1/keep_prob}"

    # --- bf16 case (native-dtype multiply path) ----------------------------
    xb = jax.random.normal(jax.random.PRNGKey(1), (2, 16, 64), dtype=jnp.bfloat16)
    yb = jax.block_until_ready(drop_path(xb, seed=3, drop_prob=0.5, training=True))
    mask_b = _make_mask(jax.random.PRNGKey(3), 16, 0.5, True, xb.dtype)
    ref_b = xb * mask_b.reshape(1, 16, 1)
    assert jnp.allclose(yb.astype(jnp.float32), ref_b.astype(jnp.float32),
                        atol=1e-2, rtol=1e-2), "bf16 output mismatch"

    # --- 4-D input (B, N, H, W) trailing-dim collapse ----------------------
    x4 = jax.random.normal(jax.random.PRNGKey(2), (2, 4, 16, 16), dtype=jnp.float32)
    y4 = jax.block_until_ready(drop_path(x4, seed=7, drop_prob=0.25, training=True))
    mask4 = _make_mask(jax.random.PRNGKey(7), 4, 0.75, True, x4.dtype)
    ref4 = x4 * mask4.reshape(1, 4, 1, 1)
    assert jnp.allclose(y4, ref4, atol=1e-6), "4-D output mismatch vs reference"

    # --- eval mode / drop_prob=0 pass-through ------------------------------
    module.training = False
    y_eval = jax.block_until_ready(module(x, seed=0))
    assert jnp.array_equal(y_eval, x)

    print("KERNEL_OK")
</pallas_src>

<mosaic_0001>
module attributes {stable_mosaic.version = 11 : i64} {
  func.func @_drop_path_kernel(%arg0: i32, %arg1: i32, %arg2: memref<1x256xf32, #tpu.memory_space<vmem>>, %arg3: memref<2x256xf32, #tpu.memory_space<vmem>>, %arg4: memref<2x256xf32, #tpu.memory_space<vmem>>) attributes {dimension_semantics = [#tpu.dimension_semantics<parallel>, #tpu.dimension_semantics<parallel>], iteration_bounds = array<i64: 1, 1>, scalar_prefetch = 0 : i64, scratch_operands = 0 : i64, tpu.core_type = #tpu.core_type<tc>, window_params = [{transform_indices = @transform_0, window_bounds = array<i64: 1, 256>}, {transform_indices = @transform_1, window_bounds = array<i64: 2, 256>}, {transform_indices = @transform_2, window_bounds = array<i64: 2, 256>}]} {
    %c0 = arith.constant 0 : index
    %c0_0 = arith.constant 0 : index
    %0 = vector.load %arg3[%c0, %c0_0] : memref<2x256xf32, #tpu.memory_space<vmem>>, vector<2x256xf32>
    %c0_1 = arith.constant 0 : index
    %c0_2 = arith.constant 0 : index
    %1 = vector.load %arg2[%c0_1, %c0_2] : memref<1x256xf32, #tpu.memory_space<vmem>>, vector<1x256xf32>
    %2 = vector.broadcast %1 : vector<1x256xf32> to vector<2x256xf32>
    %3 = arith.mulf %0, %2 : vector<2x256xf32>
    %c0_3 = arith.constant 0 : index
    %c0_4 = arith.constant 0 : index
    %4 = vector.load %arg4[%c0_3, %c0_4] : memref<2x256xf32, #tpu.memory_space<vmem>>, vector<2x256xf32>
    tpu.vector_store %arg4[%c0_3, %c0_4], %3 {strides = array<i32>} : memref<2x256xf32, #tpu.memory_space<vmem>>, vector<2x256xf32>,
    return
  }
  func.func @transform_0(%arg0: i32, %arg1: i32) -> (i32, i32) {
    %c0_i32 = arith.constant 0 : i32
    %c0_i32_0 = arith.constant 0 : i32
    return %c0_i32, %arg1 : i32, i32
  }
  func.func @transform_1(%arg0: i32, %arg1: i32) -> (i32, i32) {
    %c0_i32 = arith.constant 0 : i32
    return %arg0, %arg1 : i32, i32
  }
  func.func @transform_2(%arg0: i32, %arg1: i32) -> (i32, i32) {
    %c0_i32 = arith.constant 0 : i32
    return %arg0, %arg1 : i32, i32
  }
}

</mosaic_0001>

<llo_original>
// kernel: tpu_custom_call.1
$region0: #{tpu_custom_call.1}
  #allocation0 [shape = 'u32[]', space=smem, size = 0x4, offset = 0x4, fixed_abs, tag = 'smem constant byte address 0x4 - core index']
  #allocation1 [shape = 'u32[144,128]{1,0:T(1,128)}', space=vmem, size = 0x12000, scoped, tag = 'internal scratch']
  %s0 = inlined_call_operand.hbm [shape: f32[1,256], index: 0, kind: input, shape index: {}]
  %s1 = inlined_call_operand.hbm [shape: f32[2,256], index: 1, kind: input, shape index: {}]
  %s2 = inlined_call_operand.hbm [shape: f32[2,256], index: 2, kind: output, shape index: {}]
  %s3 = sld [smem:[#allocation0]]
  $region26: #{tpu_custom_call.1} parent=0
    _
  %s5 = ssub.s32 1, %s3
  %s6 = scalar_select 0, %s5, %s3
  $region1: #{tpu_custom_call.1} parent=0
    #allocation2 [shape = 'u8[1024]{0}', space=vmem, size = 0x400, scoped, tag = 'input window, operand 0, single buffered']
    #allocation3 [shape = 's32[1]{0}', space=sflag, size = 0x4, scoped, tag = 'scoped memory for tpu_custom_call.1']
    #allocation4 [shape = 's32[1]{0}', space=sflag, size = 0x4, scoped, tag = 'scoped memory for tpu_custom_call.1']
    #allocation5 [shape = 'u8[2048]{0}', space=vmem, size = 0x800, scoped, tag = 'input window, operand 1, single buffered']
    #allocation6 [shape = 's32[1]{0}', space=sflag, size = 0x4, scoped, tag = 'scoped memory for tpu_custom_call.1']
    #allocation7 [shape = 'u8[2048]{0}', space=vmem, size = 0x800, scoped, tag = 'output window, operand 0, single buffered']
    %7 = vsyncpa [#allocation3], 0
    %8 = vsyncpa [#allocation6], 0
    %9 = vsyncpa [#allocation4], 0
    // Predicated region
    $region2: #{tpu_custom_call.1} parent=1 // pred_check
      _
    $region3: #{tpu_custom_call.1} parent=1 // pred_check_branch
      %11 = sbr.rel (0) target = $region5
    $region4: #{tpu_custom_call.1} parent=1 // pred_region
      %s13 = ssub.s32 32, 32
      %14 = vsyncadd [#allocation3], %s13
      %s16 = sshll.u32 [#allocation2], 4
      %s17 = int_to_ptr.vmem [resolvable:$true] %s16
      %19 = dma.hbm_to_vmem [thread:$0]  %s0, 32, %s17, [#allocation3]
    $region5: #{tpu_custom_call.1} parent=1 // pred_fallthru
      _
    // Predicated region
    $region6: #{tpu_custom_call.1} parent=1 // pred_check
      _
    $region7: #{tpu_custom_call.1} parent=1 // pred_check_branch
      %21 = sbr.rel (0) target = $region9
    $region8: #{tpu_custom_call.1} parent=1 // pred_region
      %s23 = ssub.s32 64, 64
      %24 = vsyncadd [#allocation6], %s23
      %s26 = sshll.u32 [#allocation5], 4
      %s27 = int_to_ptr.vmem [resolvable:$true] %s26
      %29 = dma.hbm_to_vmem [thread:$0]  %s1, 64, %s27, [#allocation6]
    $region9: #{tpu_custom_call.1} parent=1 // pred_fallthru
      _
    // Predicated region
    $region10: #{tpu_custom_call.1} parent=1 // pred_check
      _
    $region11: #{tpu_custom_call.1} parent=1 // pred_check_branch
      %31 = sbr.rel (0) target = $region13
    $region12: #{tpu_custom_call.1} parent=1 // pred_region
      %32 = dma.done [#allocation3], 32
    $region13: #{tpu_custom_call.1} parent=1 // pred_fallthru
      _
    // Predicated region
    $region14: #{tpu_custom_call.1} parent=1 // pred_check
      _
    $region15: #{tpu_custom_call.1} parent=1 // pred_check_branch
      %34 = sbr.rel (0) target = $region17
    $region16: #{tpu_custom_call.1} parent=1 // pred_region
      %35 = dma.done [#allocation6], 64
    $region17: #{tpu_custom_call.1} parent=1 // pred_fallthru
      _
    %v36 = vld [vmem:[#allocation5] sm:$0xf]
    %v37 = vld [vmem:[#allocation2] sm:$0x3]
    %v39 = vlaneseq
    %v40 = vshrl.u32 %v39, 7
    %v41 = vsub.s32 0, %v40
    %v42 = vrot.slane %v37, %v41
    %v43 = vlaneseq
    %v44 = vshrl.u32 %v43, 7
    %v45 = vsub.s32 1, %v44
    %v46 = vrot.slane %v37, %v45
    %v47 = vcombine.low %v42, %v46
    %v49 = vunpack.c.l.s4 1983009808
    %v50 = vunpack.c.0.s8 %v49
    %v51 = vlaneseq
    %v52 = vshrl.u32 %v51, 7
    %v53 = vsub.s32 %v50, %v52
    %v54 = vrot.slane %v47, %v53
    %v56 = vmul.f32 %v36, %v54
    %57 = vst [vmem:[#allocation7] sm:$0xf] %v56
    // Predicated region
    $region18: #{tpu_custom_call.1} parent=1 // pred_check
      _
    $region19: #{tpu_custom_call.1} parent=1 // pred_check_branch
      %59 = sbr.rel (0) target = $region21
    $region20: #{tpu_custom_call.1} parent=1 // pred_region
      %s61 = ssub.s32 64, 64
      %62 = vsyncadd [#allocation4], %s61
      %s64 = sshll.u32 [#allocation7], 4
      %s65 = int_to_ptr.vmem [resolvable:$true] %s64
      %67 = dma.vmem_to_hbm [thread:$0]  %s65, 64, %s2, [#allocation4]
    $region21: #{tpu_custom_call.1} parent=1 // pred_fallthru
      _
    // Predicated region
    $region22: #{tpu_custom_call.1} parent=1 // pred_check
      _
    $region23: #{tpu_custom_call.1} parent=1 // pred_check_branch
      %69 = sbr.rel (0) target = $region25
    $region24: #{tpu_custom_call.1} parent=1 // pred_region
      %70 = dma.done [#allocation4], 64
    $region25: #{tpu_custom_call.1} parent=1 // pred_fallthru
      _
    %71 = vsyncpa [#allocation3], 1
    %72 = vsyncpa [#allocation6], 1
    %73 = vsyncpa [#allocation4], 1

</llo_original>
